<compile_context>
chip_gen: v7x
topology: tpu7x:2x2x1
jax: 0.10.0
libtpu: 0.0.40
codegen_flags: <defaults>
</compile_context>

<pallas_src>
import functools
import math

import jax
import jax.numpy as jnp
from jax.experimental import pallas as pl
from jax.experimental.pallas import tpu as pltpu


LEAKY_SLOPE = 0.01  # PyTorch nn.LeakyReLU default negative_slope


def _round_up(n, m):
    return ((n + m - 1) // m) * m


def _leaky_relu(v):
    return jnp.where(v >= 0, v, LEAKY_SLOPE * v)


def _linear_f32(h, w_ref, b_ref):
    # h: (TB, in) f32, w_ref: (in, out), b_ref: (1, out); math kept in f32.
    w = w_ref[...].astype(jnp.float32)
    b = b_ref[...].astype(jnp.float32)
    return jnp.dot(h, w, preferred_element_type=jnp.float32) + b


def make_autoencoder_kernel(n_enc, n_dec):
    """Kernel over one (TB, input_dims) batch tile; params are full-resident."""

    def kernel(x_ref, *refs):
        recon_ref = refs[-1]
        prefs = refs[:-1]  # interleaved [w0, b0, w1, b1, ...]

        h = x_ref[...].astype(jnp.float32)

        idx = 0
        # ---- encoder: LeakyReLU after every layer except the last ----
        for i in range(n_enc):
            w, b = prefs[idx], prefs[idx + 1]
            idx += 2
            h = _linear_f32(h, w, b)
            if i < n_enc - 1:
                h = _leaky_relu(h)

        # ---- decoder: LeakyReLU on all but last, Sigmoid on last ----
        for i in range(n_dec):
            w, b = prefs[idx], prefs[idx + 1]
            idx += 2
            h = _linear_f32(h, w, b)
            if i < n_dec - 1:
                h = _leaky_relu(h)
            else:
                h = 1.0 / (1.0 + jnp.exp(-h))  # sigmoid (EUP exp, f32)

        recon_ref[...] = h.astype(recon_ref.dtype)

    return kernel


def _layer_dims(input_dims, max_dims, latent_dims):
    """(fan_in, fan_out) per Linear, mirroring the PyTorch constructor."""
    log_max = int(math.log2(max_dims))
    log_lat = int(math.log2(latent_dims))

    enc_logs = list(range(log_max, log_lat - 1, -1))
    dims = []
    for i, ld in enumerate(enc_logs):
        if i == 0:
            dims.append((input_dims, 2 ** ld))
        else:
            dims.append((2 ** (ld + 1), 2 ** ld))

    dec_logs = list(range(log_lat, log_max + 1))
    last = len(dec_logs) - 1
    for i, ld in enumerate(dec_logs):
        if i == last:
            dims.append((2 ** ld, input_dims))
        else:
            dims.append((2 ** ld, 2 ** (ld + 1)))
    return dims


def init_params(key, input_dims, max_dims, latent_dims, dtype=jnp.bfloat16):
    """PyTorch nn.Linear default init: U(-1/sqrt(fan_in), 1/sqrt(fan_in)).

    Weights stored as (in, out) so the kernel computes y = x @ W + b
    (equivalent to PyTorch's y = x @ W.T + b with its (out, in) layout).
    Biases stored as (1, out) rows.
    """
    params = []
    for fan_in, fan_out in _layer_dims(input_dims, max_dims, latent_dims):
        key, kw, kb = jax.random.split(key, 3)
        bound = 1.0 / math.sqrt(fan_in)
        w = jax.random.uniform(kw, (fan_in, fan_out), jnp.float32, -bound, bound)
        b = jax.random.uniform(kb, (1, fan_out), jnp.float32, -bound, bound)
        params.append(w.astype(dtype))
        params.append(b.astype(dtype))
    return params


@functools.partial(jax.jit, static_argnames=("block_b",))
def autoencoder_forward(x, params, *, block_b=512):
    """recons = decoder(encoder(x)); runs the whole MLP chain in one kernel."""
    B, input_dims = x.shape
    n_layers = len(params) // 2
    n_enc = n_layers // 2
    n_dec = n_layers - n_enc

    # Batch tile: multiple of 8 (f32 sublane), capped at block_b (~512 keeps
    # per-buffer VMEM at TB*128*4B ≈ 256 KiB, well inside v7x's 64 MiB VMEM
    # while still reaching ~85% of HBM roofline per measured tiling data).
    TB = min(block_b, _round_up(B, 8))
    B_pad = _round_up(B, TB)
    x_p = jnp.pad(x, ((0, B_pad - B), (0, 0))) if B_pad != B else x

    grid = (B_pad // TB,)

    in_specs = [pl.BlockSpec((TB, input_dims), lambda i: (i, 0))]
    for p in params:
        # Full-block, grid-invariant -> weights/biases stay resident in VMEM.
        in_specs.append(pl.BlockSpec(p.shape, lambda i: (0, 0)))
    out_spec = pl.BlockSpec((TB, input_dims), lambda i: (i, 0))

    recon_p = pl.pallas_call(
        make_autoencoder_kernel(n_enc, n_dec),
        out_shape=jax.ShapeDtypeStruct((B_pad, input_dims), x.dtype),
        grid=grid,
        in_specs=in_specs,
        out_specs=out_spec,
        compiler_params=pltpu.CompilerParams(
            dimension_semantics=("parallel",),  # megacore sharding on v7x
            vmem_limit_bytes=32 * 1024 * 1024,
        ),
    )(x_p, *params)

    return recon_p[:B] if B_pad != B else recon_p


def reference_forward(x, params, n_enc):
    """Pure-JAX reference (same f32 math) for a correctness check."""
    n_layers = len(params) // 2
    h = x.astype(jnp.float32)
    for i in range(n_layers):
        w = params[2 * i].astype(jnp.float32)
        b = params[2 * i + 1].astype(jnp.float32)
        h = h @ w + b
        if i == n_layers - 1:
            h = jax.nn.sigmoid(h)
        elif i != n_enc - 1:
            h = jnp.where(h >= 0, h, LEAKY_SLOPE * h)
    return h


if __name__ == "__main__":
    # Small shapes consistent with the module: AutoEncoder(16, 32, 4)
    batch = 8
    input_dims = 16
    max_dims = 32
    latent_dims = 4
    storage_dtype = jnp.bfloat16  # halves HBM traffic; kernel math stays f32

    key = jax.random.PRNGKey(0)
    kx, kp = jax.random.split(key)
    x = jax.random.uniform(kx, (batch, input_dims), jnp.float32).astype(storage_dtype)
    params = init_params(kp, input_dims, max_dims, latent_dims, dtype=storage_dtype)

    recon = autoencoder_forward(x, params)
    jax.block_until_ready(recon)

    assert recon.shape == (batch, input_dims)
    assert recon.dtype == storage_dtype

    ref = reference_forward(x, params, n_enc=len(params) // 4)
    max_err = float(jnp.max(jnp.abs(recon.astype(jnp.float32) - ref)))
    assert max_err < 2e-2, f"max abs err {max_err}"

    print("KERNEL_OK")
</pallas_src>

<mosaic_0001>
module attributes {stable_mosaic.version = 11 : i64} {
  func.func @kernel(%arg0: i32, %arg1: memref<8x16xbf16, #tpu.memory_space<vmem>>, %arg2: memref<16x32xbf16, #tpu.memory_space<vmem>>, %arg3: memref<1x32xbf16, #tpu.memory_space<vmem>>, %arg4: memref<32x16xbf16, #tpu.memory_space<vmem>>, %arg5: memref<1x16xbf16, #tpu.memory_space<vmem>>, %arg6: memref<16x8xbf16, #tpu.memory_space<vmem>>, %arg7: memref<1x8xbf16, #tpu.memory_space<vmem>>, %arg8: memref<8x4xbf16, #tpu.memory_space<vmem>>, %arg9: memref<1x4xbf16, #tpu.memory_space<vmem>>, %arg10: memref<4x8xbf16, #tpu.memory_space<vmem>>, %arg11: memref<1x8xbf16, #tpu.memory_space<vmem>>, %arg12: memref<8x16xbf16, #tpu.memory_space<vmem>>, %arg13: memref<1x16xbf16, #tpu.memory_space<vmem>>, %arg14: memref<16x32xbf16, #tpu.memory_space<vmem>>, %arg15: memref<1x32xbf16, #tpu.memory_space<vmem>>, %arg16: memref<32x16xbf16, #tpu.memory_space<vmem>>, %arg17: memref<1x16xbf16, #tpu.memory_space<vmem>>, %arg18: memref<8x16xbf16, #tpu.memory_space<vmem>>) attributes {dimension_semantics = [#tpu.dimension_semantics<parallel>], iteration_bounds = array<i64: 1>, scalar_prefetch = 0 : i64, scratch_operands = 0 : i64, tpu.core_type = #tpu.core_type<tc>, window_params = [{transform_indices = @transform_0, window_bounds = array<i64: 8, 16>}, {pipeline_mode = #tpu.pipeline_mode<synchronous>, transform_indices = @transform_1, window_bounds = array<i64: 16, 32>}, {pipeline_mode = #tpu.pipeline_mode<synchronous>, transform_indices = @transform_2, window_bounds = array<i64: 1, 32>}, {pipeline_mode = #tpu.pipeline_mode<synchronous>, transform_indices = @transform_3, window_bounds = array<i64: 32, 16>}, {pipeline_mode = #tpu.pipeline_mode<synchronous>, transform_indices = @transform_4, window_bounds = array<i64: 1, 16>}, {pipeline_mode = #tpu.pipeline_mode<synchronous>, transform_indices = @transform_5, window_bounds = array<i64: 16, 8>}, {pipeline_mode = #tpu.pipeline_mode<synchronous>, transform_indices = @transform_6, window_bounds = array<i64: 1, 8>}, {pipeline_mode = #tpu.pipeline_mode<synchronous>, transform_indices = @transform_7, window_bounds = array<i64: 8, 4>}, {pipeline_mode = #tpu.pipeline_mode<synchronous>, transform_indices = @transform_8, window_bounds = array<i64: 1, 4>}, {pipeline_mode = #tpu.pipeline_mode<synchronous>, transform_indices = @transform_9, window_bounds = array<i64: 4, 8>}, {pipeline_mode = #tpu.pipeline_mode<synchronous>, transform_indices = @transform_10, window_bounds = array<i64: 1, 8>}, {pipeline_mode = #tpu.pipeline_mode<synchronous>, transform_indices = @transform_11, window_bounds = array<i64: 8, 16>}, {pipeline_mode = #tpu.pipeline_mode<synchronous>, transform_indices = @transform_12, window_bounds = array<i64: 1, 16>}, {pipeline_mode = #tpu.pipeline_mode<synchronous>, transform_indices = @transform_13, window_bounds = array<i64: 16, 32>}, {pipeline_mode = #tpu.pipeline_mode<synchronous>, transform_indices = @transform_14, window_bounds = array<i64: 1, 32>}, {pipeline_mode = #tpu.pipeline_mode<synchronous>, transform_indices = @transform_15, window_bounds = array<i64: 32, 16>}, {pipeline_mode = #tpu.pipeline_mode<synchronous>, transform_indices = @transform_16, window_bounds = array<i64: 1, 16>}, {transform_indices = @transform_17, window_bounds = array<i64: 8, 16>}]} {
    %c0 = arith.constant 0 : index
    %c0_0 = arith.constant 0 : index
    %0 = vector.load %arg1[%c0, %c0_0] : memref<8x16xbf16, #tpu.memory_space<vmem>>, vector<8x16xbf16>
    %1 = arith.extf %0 : vector<8x16xbf16> to vector<8x16xf32>
    %c0_1 = arith.constant 0 : index
    %c0_2 = arith.constant 0 : index
    %2 = vector.load %arg2[%c0_1, %c0_2] : memref<16x32xbf16, #tpu.memory_space<vmem>>, vector<16x32xbf16>
    %3 = arith.extf %2 : vector<16x32xbf16> to vector<16x32xf32>
    %c0_3 = arith.constant 0 : index
    %c0_4 = arith.constant 0 : index
    %4 = vector.load %arg3[%c0_3, %c0_4] : memref<1x32xbf16, #tpu.memory_space<vmem>>, vector<1x32xbf16>
    %5 = arith.extf %4 : vector<1x32xbf16> to vector<1x32xf32>
    %cst = arith.constant dense<0.000000e+00> : vector<8x32xf32>
    %6 = tpu.matmul %1, %3, %cst {dimension_numbers = #tpu.dot_dimension_numbers<[1], [0], [0], [1], [0, 0, 1, 1], [], []>} : vector<8x16xf32>, vector<16x32xf32>, vector<8x32xf32> -> vector<8x32xf32>
    %7 = vector.broadcast %5 : vector<1x32xf32> to vector<8x32xf32>
    %8 = arith.addf %6, %7 : vector<8x32xf32>
    %cst_5 = arith.constant 0.000000e+00 : f32
    %9 = vector.broadcast %cst_5 : f32 to vector<8x32xf32>
    %10 = arith.cmpf oge, %8, %9 : vector<8x32xf32>
    %cst_6 = arith.constant 0.00999999977 : f32
    %11 = vector.broadcast %cst_6 : f32 to vector<8x32xf32>
    %12 = arith.mulf %11, %8 : vector<8x32xf32>
    %13 = arith.select %10, %8, %12 : vector<8x32xi1>, vector<8x32xf32>
    %c0_7 = arith.constant 0 : index
    %c0_8 = arith.constant 0 : index
    %14 = vector.load %arg4[%c0_7, %c0_8] : memref<32x16xbf16, #tpu.memory_space<vmem>>, vector<32x16xbf16>
    %15 = arith.extf %14 : vector<32x16xbf16> to vector<32x16xf32>
    %c0_9 = arith.constant 0 : index
    %c0_10 = arith.constant 0 : index
    %16 = vector.load %arg5[%c0_9, %c0_10] : memref<1x16xbf16, #tpu.memory_space<vmem>>, vector<1x16xbf16>
    %17 = arith.extf %16 : vector<1x16xbf16> to vector<1x16xf32>
    %cst_11 = arith.constant dense<0.000000e+00> : vector<8x16xf32>
    %18 = tpu.matmul %13, %15, %cst_11 {dimension_numbers = #tpu.dot_dimension_numbers<[1], [0], [0], [1], [0, 0, 1, 1], [], []>} : vector<8x32xf32>, vector<32x16xf32>, vector<8x16xf32> -> vector<8x16xf32>
    %19 = vector.broadcast %17 : vector<1x16xf32> to vector<8x16xf32>
    %20 = arith.addf %18, %19 : vector<8x16xf32>
    %cst_12 = arith.constant 0.000000e+00 : f32
    %21 = vector.broadcast %cst_12 : f32 to vector<8x16xf32>
    %22 = arith.cmpf oge, %20, %21 : vector<8x16xf32>
    %cst_13 = arith.constant 0.00999999977 : f32
    %23 = vector.broadcast %cst_13 : f32 to vector<8x16xf32>
    %24 = arith.mulf %23, %20 : vector<8x16xf32>
    %25 = arith.select %22, %20, %24 : vector<8x16xi1>, vector<8x16xf32>
    %c0_14 = arith.constant 0 : index
    %c0_15 = arith.constant 0 : index
    %26 = vector.load %arg6[%c0_14, %c0_15] : memref<16x8xbf16, #tpu.memory_space<vmem>>, vector<16x8xbf16>
    %27 = arith.extf %26 : vector<16x8xbf16> to vector<16x8xf32>
    %c0_16 = arith.constant 0 : index
    %c0_17 = arith.constant 0 : index
    %28 = vector.load %arg7[%c0_16, %c0_17] : memref<1x8xbf16, #tpu.memory_space<vmem>>, vector<1x8xbf16>
    %29 = arith.extf %28 : vector<1x8xbf16> to vector<1x8xf32>
    %cst_18 = arith.constant dense<0.000000e+00> : vector<8x8xf32>
    %30 = tpu.matmul %25, %27, %cst_18 {dimension_numbers = #tpu.dot_dimension_numbers<[1], [0], [0], [1], [0, 0, 1, 1], [], []>} : vector<8x16xf32>, vector<16x8xf32>, vector<8x8xf32> -> vector<8x8xf32>
    %31 = vector.broadcast %29 : vector<1x8xf32> to vector<8x8xf32>
    %32 = arith.addf %30, %31 : vector<8x8xf32>
    %cst_19 = arith.constant 0.000000e+00 : f32
    %33 = vector.broadcast %cst_19 : f32 to vector<8x8xf32>
    %34 = arith.cmpf oge, %32, %33 : vector<8x8xf32>
    %cst_20 = arith.constant 0.00999999977 : f32
    %35 = vector.broadcast %cst_20 : f32 to vector<8x8xf32>
    %36 = arith.mulf %35, %32 : vector<8x8xf32>
    %37 = arith.select %34, %32, %36 : vector<8x8xi1>, vector<8x8xf32>
    %c0_21 = arith.constant 0 : index
    %c0_22 = arith.constant 0 : index
    %38 = vector.load %arg8[%c0_21, %c0_22] : memref<8x4xbf16, #tpu.memory_space<vmem>>, vector<8x4xbf16>
    %39 = arith.extf %38 : vector<8x4xbf16> to vector<8x4xf32>
    %c0_23 = arith.constant 0 : index
    %c0_24 = arith.constant 0 : index
    %40 = vector.load %arg9[%c0_23, %c0_24] : memref<1x4xbf16, #tpu.memory_space<vmem>>, vector<1x4xbf16>
    %41 = arith.extf %40 : vector<1x4xbf16> to vector<1x4xf32>
    %cst_25 = arith.constant dense<0.000000e+00> : vector<8x4xf32>
    %42 = tpu.matmul %37, %39, %cst_25 {dimension_numbers = #tpu.dot_dimension_numbers<[1], [0], [0], [1], [0, 0, 1, 1], [], []>} : vector<8x8xf32>, vector<8x4xf32>, vector<8x4xf32> -> vector<8x4xf32>
    %43 = vector.broadcast %41 : vector<1x4xf32> to vector<8x4xf32>
    %44 = arith.addf %42, %43 : vector<8x4xf32>
    %c0_26 = arith.constant 0 : index
    %c0_27 = arith.constant 0 : index
    %45 = vector.load %arg10[%c0_26, %c0_27] : memref<4x8xbf16, #tpu.memory_space<vmem>>, vector<4x8xbf16>
    %46 = arith.extf %45 : vector<4x8xbf16> to vector<4x8xf32>
    %c0_28 = arith.constant 0 : index
    %c0_29 = arith.constant 0 : index
    %47 = vector.load %arg11[%c0_28, %c0_29] : memref<1x8xbf16, #tpu.memory_space<vmem>>, vector<1x8xbf16>
    %48 = arith.extf %47 : vector<1x8xbf16> to vector<1x8xf32>
    %cst_30 = arith.constant dense<0.000000e+00> : vector<8x8xf32>
    %49 = tpu.matmul %44, %46, %cst_30 {dimension_numbers = #tpu.dot_dimension_numbers<[1], [0], [0], [1], [0, 0, 1, 1], [], []>} : vector<8x4xf32>, vector<4x8xf32>, vector<8x8xf32> -> vector<8x8xf32>
    %50 = vector.broadcast %48 : vector<1x8xf32> to vector<8x8xf32>
    %51 = arith.addf %49, %50 : vector<8x8xf32>
    %cst_31 = arith.constant 0.000000e+00 : f32
    %52 = vector.broadcast %cst_31 : f32 to vector<8x8xf32>
    %53 = arith.cmpf oge, %51, %52 : vector<8x8xf32>
    %cst_32 = arith.constant 0.00999999977 : f32
    %54 = vector.broadcast %cst_32 : f32 to vector<8x8xf32>
    %55 = arith.mulf %54, %51 : vector<8x8xf32>
    %56 = arith.select %53, %51, %55 : vector<8x8xi1>, vector<8x8xf32>
    %c0_33 = arith.constant 0 : index
    %c0_34 = arith.constant 0 : index
    %57 = vector.load %arg12[%c0_33, %c0_34] : memref<8x16xbf16, #tpu.memory_space<vmem>>, vector<8x16xbf16>
    %58 = arith.extf %57 : vector<8x16xbf16> to vector<8x16xf32>
    %c0_35 = arith.constant 0 : index
    %c0_36 = arith.constant 0 : index
    %59 = vector.load %arg13[%c0_35, %c0_36] : memref<1x16xbf16, #tpu.memory_space<vmem>>, vector<1x16xbf16>
    %60 = arith.extf %59 : vector<1x16xbf16> to vector<1x16xf32>
    %cst_37 = arith.constant dense<0.000000e+00> : vector<8x16xf32>
    %61 = tpu.matmul %56, %58, %cst_37 {dimension_numbers = #tpu.dot_dimension_numbers<[1], [0], [0], [1], [0, 0, 1, 1], [], []>} : vector<8x8xf32>, vector<8x16xf32>, vector<8x16xf32> -> vector<8x16xf32>
    %62 = vector.broadcast %60 : vector<1x16xf32> to vector<8x16xf32>
    %63 = arith.addf %61, %62 : vector<8x16xf32>
    %cst_38 = arith.constant 0.000000e+00 : f32
    %64 = vector.broadcast %cst_38 : f32 to vector<8x16xf32>
    %65 = arith.cmpf oge, %63, %64 : vector<8x16xf32>
    %cst_39 = arith.constant 0.00999999977 : f32
    %66 = vector.broadcast %cst_39 : f32 to vector<8x16xf32>
    %67 = arith.mulf %66, %63 : vector<8x16xf32>
    %68 = arith.select %65, %63, %67 : vector<8x16xi1>, vector<8x16xf32>
    %c0_40 = arith.constant 0 : index
    %c0_41 = arith.constant 0 : index
    %69 = vector.load %arg14[%c0_40, %c0_41] : memref<16x32xbf16, #tpu.memory_space<vmem>>, vector<16x32xbf16>
    %70 = arith.extf %69 : vector<16x32xbf16> to vector<16x32xf32>
    %c0_42 = arith.constant 0 : index
    %c0_43 = arith.constant 0 : index
    %71 = vector.load %arg15[%c0_42, %c0_43] : memref<1x32xbf16, #tpu.memory_space<vmem>>, vector<1x32xbf16>
    %72 = arith.extf %71 : vector<1x32xbf16> to vector<1x32xf32>
    %cst_44 = arith.constant dense<0.000000e+00> : vector<8x32xf32>
    %73 = tpu.matmul %68, %70, %cst_44 {dimension_numbers = #tpu.dot_dimension_numbers<[1], [0], [0], [1], [0, 0, 1, 1], [], []>} : vector<8x16xf32>, vector<16x32xf32>, vector<8x32xf32> -> vector<8x32xf32>
    %74 = vector.broadcast %72 : vector<1x32xf32> to vector<8x32xf32>
    %75 = arith.addf %73, %74 : vector<8x32xf32>
    %cst_45 = arith.constant 0.000000e+00 : f32
    %76 = vector.broadcast %cst_45 : f32 to vector<8x32xf32>
    %77 = arith.cmpf oge, %75, %76 : vector<8x32xf32>
    %cst_46 = arith.constant 0.00999999977 : f32
    %78 = vector.broadcast %cst_46 : f32 to vector<8x32xf32>
    %79 = arith.mulf %78, %75 : vector<8x32xf32>
    %80 = arith.select %77, %75, %79 : vector<8x32xi1>, vector<8x32xf32>
    %c0_47 = arith.constant 0 : index
    %c0_48 = arith.constant 0 : index
    %81 = vector.load %arg16[%c0_47, %c0_48] : memref<32x16xbf16, #tpu.memory_space<vmem>>, vector<32x16xbf16>
    %82 = arith.extf %81 : vector<32x16xbf16> to vector<32x16xf32>
    %c0_49 = arith.constant 0 : index
    %c0_50 = arith.constant 0 : index
    %83 = vector.load %arg17[%c0_49, %c0_50] : memref<1x16xbf16, #tpu.memory_space<vmem>>, vector<1x16xbf16>
    %84 = arith.extf %83 : vector<1x16xbf16> to vector<1x16xf32>
    %cst_51 = arith.constant dense<0.000000e+00> : vector<8x16xf32>
    %85 = tpu.matmul %80, %82, %cst_51 {dimension_numbers = #tpu.dot_dimension_numbers<[1], [0], [0], [1], [0, 0, 1, 1], [], []>} : vector<8x32xf32>, vector<32x16xf32>, vector<8x16xf32> -> vector<8x16xf32>
    %86 = vector.broadcast %84 : vector<1x16xf32> to vector<8x16xf32>
    %87 = arith.addf %85, %86 : vector<8x16xf32>
    %cst_52 = arith.constant 0.000000e+00 : f32
    %88 = vector.broadcast %cst_52 : f32 to vector<8x16xf32>
    %89 = arith.subf %88, %87 : vector<8x16xf32>
    %90 = math.exp %89 : vector<8x16xf32>
    %cst_53 = arith.constant 1.000000e+00 : f32
    %91 = vector.broadcast %cst_53 : f32 to vector<8x16xf32>
    %92 = arith.addf %91, %90 : vector<8x16xf32>
    %cst_54 = arith.constant 1.000000e+00 : f32
    %93 = vector.broadcast %cst_54 : f32 to vector<8x16xf32>
    %94 = arith.divf %93, %92 : vector<8x16xf32>
    %95 = arith.truncf %94 : vector<8x16xf32> to vector<8x16xbf16>
    %c0_55 = arith.constant 0 : index
    %c0_56 = arith.constant 0 : index
    %96 = vector.load %arg18[%c0_55, %c0_56] : memref<8x16xbf16, #tpu.memory_space<vmem>>, vector<8x16xbf16>
    tpu.vector_store %arg18[%c0_55, %c0_56], %95 {strides = array<i32>} : memref<8x16xbf16, #tpu.memory_space<vmem>>, vector<8x16xbf16>,
    return
  }
  func.func @transform_0(%arg0: i32) -> (i32, i32) {
    %c0_i32 = arith.constant 0 : i32
    %c0_i32_0 = arith.constant 0 : i32
    return %arg0, %c0_i32 : i32, i32
  }
  func.func @transform_1(%arg0: i32) -> (i32, i32) {
    %c0_i32 = arith.constant 0 : i32
    %c0_i32_0 = arith.constant 0 : i32
    %c0_i32_1 = arith.constant 0 : i32
    return %c0_i32, %c0_i32_0 : i32, i32
  }
  func.func @transform_2(%arg0: i32) -> (i32, i32) {
    %c0_i32 = arith.constant 0 : i32
    %c0_i32_0 = arith.constant 0 : i32
    %c0_i32_1 = arith.constant 0 : i32
    return %c0_i32, %c0_i32_0 : i32, i32
  }
  func.func @transform_3(%arg0: i32) -> (i32, i32) {
    %c0_i32 = arith.constant 0 : i32
    %c0_i32_0 = arith.constant 0 : i32
    %c0_i32_1 = arith.constant 0 : i32
    return %c0_i32, %c0_i32_0 : i32, i32
  }
  func.func @transform_4(%arg0: i32) -> (i32, i32) {
    %c0_i32 = arith.constant 0 : i32
    %c0_i32_0 = arith.constant 0 : i32
    %c0_i32_1 = arith.constant 0 : i32
    return %c0_i32, %c0_i32_0 : i32, i32
  }
  func.func @transform_5(%arg0: i32) -> (i32, i32) {
    %c0_i32 = arith.constant 0 : i32
    %c0_i32_0 = arith.constant 0 : i32
    %c0_i32_1 = arith.constant 0 : i32
    return %c0_i32, %c0_i32_0 : i32, i32
  }
  func.func @transform_6(%arg0: i32) -> (i32, i32) {
    %c0_i32 = arith.constant 0 : i32
    %c0_i32_0 = arith.constant 0 : i32
    %c0_i32_1 = arith.constant 0 : i32
    return %c0_i32, %c0_i32_0 : i32, i32
  }
  func.func @transform_7(%arg0: i32) -> (i32, i32) {
    %c0_i32 = arith.constant 0 : i32
    %c0_i32_0 = arith.constant 0 : i32
    %c0_i32_1 = arith.constant 0 : i32
    return %c0_i32, %c0_i32_0 : i32, i32
  }
  func.func @transform_8(%arg0: i32) -> (i32, i32) {
    %c0_i32 = arith.constant 0 : i32
    %c0_i32_0 = arith.constant 0 : i32
    %c0_i32_1 = arith.constant 0 : i32
    return %c0_i32, %c0_i32_0 : i32, i32
  }
  func.func @transform_9(%arg0: i32) -> (i32, i32) {
    %c0_i32 = arith.constant 0 : i32
    %c0_i32_0 = arith.constant 0 : i32
    %c0_i32_1 = arith.constant 0 : i32
    return %c0_i32, %c0_i32_0 : i32, i32
  }
  func.func @transform_10(%arg0: i32) -> (i32, i32) {
    %c0_i32 = arith.constant 0 : i32
    %c0_i32_0 = arith.constant 0 : i32
    %c0_i32_1 = arith.constant 0 : i32
    return %c0_i32, %c0_i32_0 : i32, i32
  }
  func.func @transform_11(%arg0: i32) -> (i32, i32) {
    %c0_i32 = arith.constant 0 : i32
    %c0_i32_0 = arith.constant 0 : i32
    %c0_i32_1 = arith.constant 0 : i32
    return %c0_i32, %c0_i32_0 : i32, i32
  }
  func.func @transform_12(%arg0: i32) -> (i32, i32) {
    %c0_i32 = arith.constant 0 : i32
    %c0_i32_0 = arith.constant 0 : i32
    %c0_i32_1 = arith.constant 0 : i32
    return %c0_i32, %c0_i32_0 : i32, i32
  }
  func.func @transform_13(%arg0: i32) -> (i32, i32) {
    %c0_i32 = arith.constant 0 : i32
    %c0_i32_0 = arith.constant 0 : i32
    %c0_i32_1 = arith.constant 0 : i32
    return %c0_i32, %c0_i32_0 : i32, i32
  }
  func.func @transform_14(%arg0: i32) -> (i32, i32) {
    %c0_i32 = arith.constant 0 : i32
    %c0_i32_0 = arith.constant 0 : i32
    %c0_i32_1 = arith.constant 0 : i32
    return %c0_i32, %c0_i32_0 : i32, i32
  }
  func.func @transform_15(%arg0: i32) -> (i32, i32) {
    %c0_i32 = arith.constant 0 : i32
    %c0_i32_0 = arith.constant 0 : i32
    %c0_i32_1 = arith.constant 0 : i32
    return %c0_i32, %c0_i32_0 : i32, i32
  }
  func.func @transform_16(%arg0: i32) -> (i32, i32) {
    %c0_i32 = arith.constant 0 : i32
    %c0_i32_0 = arith.constant 0 : i32
    %c0_i32_1 = arith.constant 0 : i32
    return %c0_i32, %c0_i32_0 : i32, i32
  }
  func.func @transform_17(%arg0: i32) -> (i32, i32) {
    %c0_i32 = arith.constant 0 : i32
    %c0_i32_0 = arith.constant 0 : i32
    return %arg0, %c0_i32 : i32, i32
  }
}

</mosaic_0001>

<llo_original>
// kernel: autoencoder_forward.1
$region0: #{autoencoder_forward.1}
  #allocation0 [shape = 'u32[]', space=smem, size = 0x4, offset = 0x4, fixed_abs, tag = 'smem constant byte address 0x4 - core index']
  #allocation1 [shape = 'u32[144,128]{1,0:T(1,128)}', space=vmem, size = 0x12000, scoped, tag = 'internal scratch']
  %s0 = inlined_call_operand.vmem [shape: bf16[8,16], index: 0, kind: input, shape index: {}]
  %s1 = inlined_call_operand.vmem [shape: bf16[16,32], index: 1, kind: input, shape index: {}]
  %s2 = inlined_call_operand.vmem [shape: bf16[1,32], index: 2, kind: input, shape index: {}]
  %s3 = inlined_call_operand.vmem [shape: bf16[32,16], index: 3, kind: input, shape index: {}]
  %s4 = inlined_call_operand.vmem [shape: bf16[1,16], index: 4, kind: input, shape index: {}]
  %s5 = inlined_call_operand.vmem [shape: bf16[16,8], index: 5, kind: input, shape index: {}]
  %s6 = inlined_call_operand.vmem [shape: bf16[1,8], index: 6, kind: input, shape index: {}]
  %s7 = inlined_call_operand.vmem [shape: bf16[8,4], index: 7, kind: input, shape index: {}]
  %s8 = inlined_call_operand.vmem [shape: bf16[1,4], index: 8, kind: input, shape index: {}]
  %s9 = inlined_call_operand.vmem [shape: bf16[4,8], index: 9, kind: input, shape index: {}]
  %s10 = inlined_call_operand.vmem [shape: bf16[1,8], index: 10, kind: input, shape index: {}]
  %s11 = inlined_call_operand.vmem [shape: bf16[8,16], index: 11, kind: input, shape index: {}]
  %s12 = inlined_call_operand.vmem [shape: bf16[1,16], index: 12, kind: input, shape index: {}]
  %s13 = inlined_call_operand.vmem [shape: bf16[16,32], index: 13, kind: input, shape index: {}]
  %s14 = inlined_call_operand.vmem [shape: bf16[1,32], index: 14, kind: input, shape index: {}]
  %s15 = inlined_call_operand.vmem [shape: bf16[32,16], index: 15, kind: input, shape index: {}]
  %s16 = inlined_call_operand.vmem [shape: bf16[1,16], index: 16, kind: input, shape index: {}]
  %s17 = inlined_call_operand.hbm [shape: bf16[8,16], index: 17, kind: output, shape index: {}]
  %s18 = sld [smem:[#allocation0]]
  $region78: #{autoencoder_forward.1} parent=0
    _
  %s20 = ssub.s32 1, %s18
  %s21 = scalar_select 0, %s20, %s18
  $region1: #{autoencoder_forward.1} parent=0
    #allocation2 [shape = 'u8[2048]{0}', space=vmem, size = 0x800, scoped, tag = 'output window, operand 0, single buffered']
    #allocation3 [shape = 's32[1]{0}', space=sflag, size = 0x4, scoped, tag = 'scoped memory for autoencoder_forward.1']
    %22 = vsyncpa [#allocation3], 0
    // Predicated region
    $region2: #{autoencoder_forward.1} parent=1 // pred_check
      _
    $region3: #{autoencoder_forward.1} parent=1 // pred_check_branch
      %24 = sbr.rel (0) target = $region5
    $region4: #{autoencoder_forward.1} parent=1 // pred_region
      _
    $region5: #{autoencoder_forward.1} parent=1 // pred_fallthru
      _
    // Predicated region
    $region6: #{autoencoder_forward.1} parent=1 // pred_check
      _
    $region7: #{autoencoder_forward.1} parent=1 // pred_check_branch
      %26 = sbr.rel (0) target = $region9
    $region8: #{autoencoder_forward.1} parent=1 // pred_region
      _
    $region9: #{autoencoder_forward.1} parent=1 // pred_fallthru
      _
    // Predicated region
    $region10: #{autoencoder_forward.1} parent=1 // pred_check
      _
    $region11: #{autoencoder_forward.1} parent=1 // pred_check_branch
      %28 = sbr.rel (0) target = $region13
    $region12: #{autoencoder_forward.1} parent=1 // pred_region
      _
    $region13: #{autoencoder_forward.1} parent=1 // pred_fallthru
      _
    // Predicated region
    $region14: #{autoencoder_forward.1} parent=1 // pred_check
      _
    $region15: #{autoencoder_forward.1} parent=1 // pred_check_branch
      %30 = sbr.rel (0) target = $region17
    $region16: #{autoencoder_forward.1} parent=1 // pred_region
      _
    $region17: #{autoencoder_forward.1} parent=1 // pred_fallthru
      _
    // Predicated region
    $region18: #{autoencoder_forward.1} parent=1 // pred_check
      _
    $region19: #{autoencoder_forward.1} parent=1 // pred_check_branch
      %32 = sbr.rel (0) target = $region21
    $region20: #{autoencoder_forward.1} parent=1 // pred_region
      _
    $region21: #{autoencoder_forward.1} parent=1 // pred_fallthru
      _
    // Predicated region
    $region22: #{autoencoder_forward.1} parent=1 // pred_check
      _
    $region23: #{autoencoder_forward.1} parent=1 // pred_check_branch
      %34 = sbr.rel (0) target = $region25
    $region24: #{autoencoder_forward.1} parent=1 // pred_region
      _
    $region25: #{autoencoder_forward.1} parent=1 // pred_fallthru
      _
    // Predicated region
    $region26: #{autoencoder_forward.1} parent=1 // pred_check
      _
    $region27: #{autoencoder_forward.1} parent=1 // pred_check_branch
      %36 = sbr.rel (0) target = $region29
    $region28: #{autoencoder_forward.1} parent=1 // pred_region
      _
    $region29: #{autoencoder_forward.1} parent=1 // pred_fallthru
      _
    // Predicated region
    $region30: #{autoencoder_forward.1} parent=1 // pred_check
      _
    $region31: #{autoencoder_forward.1} parent=1 // pred_check_branch
      %38 = sbr.rel (0) target = $region33
    $region32: #{autoencoder_forward.1} parent=1 // pred_region
      _
    $region33: #{autoencoder_forward.1} parent=1 // pred_fallthru
      _
    // Predicated region
    $region34: #{autoencoder_forward.1} parent=1 // pred_check
      _
    $region35: #{autoencoder_forward.1} parent=1 // pred_check_branch
      %40 = sbr.rel (0) target = $region37
    $region36: #{autoencoder_forward.1} parent=1 // pred_region
      _
    $region37: #{autoencoder_forward.1} parent=1 // pred_fallthru
      _
    // Predicated region
    $region38: #{autoencoder_forward.1} parent=1 // pred_check
      _
    $region39: #{autoencoder_forward.1} parent=1 // pred_check_branch
      %42 = sbr.rel (0) target = $region41
    $region40: #{autoencoder_forward.1} parent=1 // pred_region
      _
    $region41: #{autoencoder_forward.1} parent=1 // pred_fallthru
      _
    // Predicated region
    $region42: #{autoencoder_forward.1} parent=1 // pred_check
      _
    $region43: #{autoencoder_forward.1} parent=1 // pred_check_branch
      %44 = sbr.rel (0) target = $region45
    $region44: #{autoencoder_forward.1} parent=1 // pred_region
      _
    $region45: #{autoencoder_forward.1} parent=1 // pred_fallthru
      _
    // Predicated region
    $region46: #{autoencoder_forward.1} parent=1 // pred_check
      _
    $region47: #{autoencoder_forward.1} parent=1 // pred_check_branch
      %46 = sbr.rel (0) target = $region49
    $region48: #{autoencoder_forward.1} parent=1 // pred_region
      _
    $region49: #{autoencoder_forward.1} parent=1 // pred_fallthru
      _
    // Predicated region
    $region50: #{autoencoder_forward.1} parent=1 // pred_check
      _
    $region51: #{autoencoder_forward.1} parent=1 // pred_check_branch
      %48 = sbr.rel (0) target = $region53
    $region52: #{autoencoder_forward.1} parent=1 // pred_region
      _
    $region53: #{autoencoder_forward.1} parent=1 // pred_fallthru
      _
    // Predicated region
    $region54: #{autoencoder_forward.1} parent=1 // pred_check
      _
    $region55: #{autoencoder_forward.1} parent=1 // pred_check_branch
      %50 = sbr.rel (0) target = $region57
    $region56: #{autoencoder_forward.1} parent=1 // pred_region
      _
    $region57: #{autoencoder_forward.1} parent=1 // pred_fallthru
      _
    // Predicated region
    $region58: #{autoencoder_forward.1} parent=1 // pred_check
      _
    $region59: #{autoencoder_forward.1} parent=1 // pred_check_branch
      %52 = sbr.rel (0) target = $region61
    $region60: #{autoencoder_forward.1} parent=1 // pred_region
      _
    $region61: #{autoencoder_forward.1} parent=1 // pred_fallthru
      _
    // Predicated region
    $region62: #{autoencoder_forward.1} parent=1 // pred_check
      _
    $region63: #{autoencoder_forward.1} parent=1 // pred_check_branch
      %54 = sbr.rel (0) target = $region65
    $region64: #{autoencoder_forward.1} parent=1 // pred_region
      _
    $region65: #{autoencoder_forward.1} parent=1 // pred_fallthru
      _
    // Predicated region
    $region66: #{autoencoder_forward.1} parent=1 // pred_check
      _
    $region67: #{autoencoder_forward.1} parent=1 // pred_check_branch
      %56 = sbr.rel (0) target = $region69
    $region68: #{autoencoder_forward.1} parent=1 // pred_region
      _
    $region69: #{autoencoder_forward.1} parent=1 // pred_fallthru
      _
    %v57 = vld [vmem:[%s0] sm:$0xf]
    %v58 = vunpack.c.l.bf16 %v57
    %v59 = vld [vmem:[%s1] sm:$0xf]
    %v60 = vld [vmem:[%s1 + $0x4] sm:$0xf]
    %v61 = vunpack.c.l.bf16 %v59
    %v62 = vunpack.c.l.bf16 %v60
    %v63 = vld [vmem:[%s2] sm:$0x1]
    %v64 = vunpack.c.l.bf16 %v63
    %v65 = vlaneseq
    %v66 = vshrl.u32 %v65, 7
    %v67 = vsub.s32 0, %v66
    %v68 = vrot.slane %v64, %v67
    %vm69 = vcmask 130048
    %v71 = vsel %vm69, %v58, 0
    %73 = vmatprep.subr.mxu0 0.0
    %74 = vmatpush1.msra.mxu0 %v61
    %75 = vmatprep.subr.mxu0 0.0
    %76 = vmatpush1.msra.mxu0 %v62
    %77 = vmatprep.subr.mxu0 0.0
    %78 = vmatpush1.msra.mxu0 0.0
    %79 = vmatprep.subr.mxu0 0.0
    %80 = vmatpush1.msra.mxu0 0.0
    %81 = vmatprep.subr.mxu0 0.0
    %82 = vmatpush1.msra.mxu0 0.0
    %83 = vmatprep.subr.mxu0 0.0
    %84 = vmatpush1.msra.mxu0 0.0
    %85 = vmatprep.subr.mxu0 0.0
    %86 = vmatpush1.msra.mxu0 0.0
    %87 = vmatprep.subr.mxu0 0.0
    %88 = vmatpush1.msra.mxu0 0.0
    %89 = vmatprep.subr.mxu0 0.0
    %90 = vmatpush1.msra.mxu0 0.0
    %91 = vmatprep.subr.mxu0 0.0
    %92 = vmatpush1.msra.mxu0 0.0
    %93 = vmatprep.subr.mxu0 0.0
    %94 = vmatpush1.msra.mxu0 0.0
    %95 = vmatprep.subr.mxu0 0.0
    %96 = vmatpush1.msra.mxu0 0.0
    %97 = vmatprep.subr.mxu0 0.0
    %98 = vmatpush1.msra.mxu0 0.0
    %99 = vmatprep.subr.mxu0 0.0
    %100 = vmatpush1.msra.mxu0 0.0
    %101 = vmatprep.subr.mxu0 0.0
    %102 = vmatpush1.msra.mxu0 0.0
    %103 = vmatprep.subr.mxu0 0.0
    %104 = vmatpush1.msra.mxu0 0.0
    %105 = vmatprep.subr.mxu0 0.0
    %106 = vmatpush1.msra.mxu0 0.0
    %107 = vmatprep.subr.mxu0 0.0
    %108 = vmatpush1.msra.mxu0 0.0
    %109 = vmatprep.subr.mxu0 0.0
    %110 = vmatpush1.msra.mxu0 0.0
    %111 = vmatprep.subr.mxu0 0.0
    %112 = vmatpush1.msra.mxu0 0.0
    %113 = vmatprep.subr.mxu0 0.0
    %114 = vmatpush1.msra.mxu0 0.0
    %115 = vmatprep.subr.mxu0 0.0
    %116 = vmatpush1.msra.mxu0 0.0
    %117 = vmatprep.subr.mxu0 0.0
    %118 = vmatpush1.msra.mxu0 0.0
    %119 = vmatprep.subr.mxu0 0.0
    %120 = vmatpush1.msra.mxu0 0.0
    %121 = vmatprep.subr.mxu0 0.0
    %122 = vmatpush1.msra.mxu0 0.0
    %123 = vmatprep.subr.mxu0 0.0
    %124 = vmatpush1.msra.mxu0 0.0
    %125 = vmatprep.subr.mxu0 0.0
    %126 = vmatpush1.msra.mxu0 0.0
    %127 = vmatprep.subr.mxu0 0.0
    %128 = vmatpush1.msra.mxu0 0.0
    %129 = vmatprep.subr.mxu0 0.0
    %130 = vmatpush1.msra.mxu0 0.0
    %131 = vmatprep.subr.mxu0 0.0
    %132 = vmatpush1.msra.mxu0 0.0
    %133 = vmatprep.subr.mxu0 0.0
    %134 = vmatpush1.msra.mxu0 0.0
    %135 = vmatprep.subr.mxu0 0.0
    %136 = vmatpush1.msra.mxu0 0.0
    %137 = vmatprep.mubr.f32.mxu0 0.0
    %138 = vmatmul.mubr.f32.gmra.mrb[0].mxu0 %v71
    %v139 = vpop.f32.mrb[0].mxu0
    %v140 = vadd.f32 %v68, %v139
    %v141 = vpop.f32.mrb[0].mxu0
    %142 = vdwg.mxu0
    %vm143 = vcmp.ge.f32.partialorder %v140, 0.0
    %v144 = vmul.f32 %v140, 0.01
    %v145 = vsel %vm143, %v140, %v144
    %v146 = vld [vmem:[%s3] sm:$0xf]
    %v147 = vld [vmem:[%s3 + $0x4] sm:$0xf]
    %v148 = vld [vmem:[%s3 + $0x8] sm:$0xf]
    %v149 = vld [vmem:[%s3 + $0xc] sm:$0xf]
    %v150 = vunpack.c.l.bf16 %v146
    %v151 = vunpack.c.l.bf16 %v147
    %v152 = vunpack.c.l.bf16 %v148
    %v153 = vunpack.c.l.bf16 %v149
    %v154 = vld [vmem:[%s4] sm:$0x1]
    %v155 = vunpack.c.l.bf16 %v154
    %v156 = vlaneseq
    %v157 = vshrl.u32 %v156, 7
    %v158 = vsub.s32 0, %v157
    %v159 = vrot.slane %v155, %v158
    %vm160 = vcmask 261120
    %v162 = vsel %vm160, %v145, 0
    %164 = vmatprep.subr.mxu0 0.0
    %165 = vmatpush1.msra.mxu0 %v150
    %166 = vmatprep.subr.mxu0 0.0
    %167 = vmatpush1.msra.mxu0 %v151
    %168 = vmatprep.subr.mxu0 0.0
    %169 = vmatpush1.msra.mxu0 %v152
    %170 = vmatprep.subr.mxu0 0.0
    %171 = vmatpush1.msra.mxu0 %v153
    %172 = vmatprep.subr.mxu0 0.0
    %173 = vmatpush1.msra.mxu0 0.0
    %174 = vmatprep.subr.mxu0 0.0
    %175 = vmatpush1.msra.mxu0 0.0
    %176 = vmatprep.subr.mxu0 0.0
    %177 = vmatpush1.msra.mxu0 0.0
    %178 = vmatprep.subr.mxu0 0.0
    %179 = vmatpush1.msra.mxu0 0.0
    %180 = vmatprep.subr.mxu0 0.0
    %181 = vmatpush1.msra.mxu0 0.0
    %182 = vmatprep.subr.mxu0 0.0
    %183 = vmatpush1.msra.mxu0 0.0
    %184 = vmatprep.subr.mxu0 0.0
    %185 = vmatpush1.msra.mxu0 0.0
    %186 = vmatprep.subr.mxu0 0.0
    %187 = vmatpush1.msra.mxu0 0.0
    %188 = vmatprep.subr.mxu0 0.0
    %189 = vmatpush1.msra.mxu0 0.0
    %190 = vmatprep.subr.mxu0 0.0
    %191 = vmatpush1.msra.mxu0 0.0
    %192 = vmatprep.subr.mxu0 0.0
    %193 = vmatpush1.msra.mxu0 0.0
    %194 = vmatprep.subr.mxu0 0.0
    %195 = vmatpush1.msra.mxu0 0.0
    %196 = vmatprep.subr.mxu0 0.0
    %197 = vmatpush1.msra.mxu0 0.0
    %198 = vmatprep.subr.mxu0 0.0
    %199 = vmatpush1.msra.mxu0 0.0
    %200 = vmatprep.subr.mxu0 0.0
    %201 = vmatpush1.msra.mxu0 0.0
    %202 = vmatprep.subr.mxu0 0.0
    %203 = vmatpush1.msra.mxu0 0.0
    %204 = vmatprep.subr.mxu0 0.0
    %205 = vmatpush1.msra.mxu0 0.0
    %206 = vmatprep.subr.mxu0 0.0
    %207 = vmatpush1.msra.mxu0 0.0
    %208 = vmatprep.subr.mxu0 0.0
    %209 = vmatpush1.msra.mxu0 0.0
    %210 = vmatprep.subr.mxu0 0.0
    %211 = vmatpush1.msra.mxu0 0.0
    %212 = vmatprep.subr.mxu0 0.0
    %213 = vmatpush1.msra.mxu0 0.0
    %214 = vmatprep.subr.mxu0 0.0
    %215 = vmatpush1.msra.mxu0 0.0
    %216 = vmatprep.subr.mxu0 0.0
    %217 = vmatpush1.msra.mxu0 0.0
    %218 = vmatprep.subr.mxu0 0.0
    %219 = vmatpush1.msra.mxu0 0.0
    %220 = vmatprep.subr.mxu0 0.0
    %221 = vmatpush1.msra.mxu0 0.0
    %222 = vmatprep.subr.mxu0 0.0
    %223 = vmatpush1.msra.mxu0 0.0
    %224 = vmatprep.subr.mxu0 0.0
    %225 = vmatpush1.msra.mxu0 0.0
    %226 = vmatprep.subr.mxu0 0.0
    %227 = vmatpush1.msra.mxu0 0.0
    %228 = vmatprep.mubr.f32.mxu0 0.0
    %229 = vmatmul.mubr.f32.gmra.mrb[0].mxu0 %v162
    %v230 = vpop.f32.mrb[0].mxu0
    %v231 = vadd.f32 %v159, %v230
    %v232 = vpop.f32.mrb[0].mxu0
    %233 = vdwg.mxu0
    %vm234 = vcmp.ge.f32.partialorder %v231, 0.0
    %v235 = vmul.f32 %v231, 0.01
    %v236 = vsel %vm234, %v231, %v235
    %v237 = vld [vmem:[%s5] sm:$0xf]
    %v238 = vld [vmem:[%s5 + $0x4] sm:$0xf]
    %v239 = vunpack.c.l.bf16 %v237
    %v240 = vunpack.c.l.bf16 %v238
    %v241 = vld [vmem:[%s6] sm:$0x1]
    %v242 = vunpack.c.l.bf16 %v241
    %v243 = vlaneseq
    %v244 = vshrl.u32 %v243, 7
    %v245 = vsub.s32 0, %v244
    %v246 = vrot.slane %v242, %v245
    %v248 = vsel %vm69, %v236, 0
    %250 = vmatprep.subr.mxu0 0.0
    %251 = vmatpush1.msra.mxu0 %v239
    %252 = vmatprep.subr.mxu0 0.0
    %253 = vmatpush1.msra.mxu0 %v240
    %254 = vmatprep.subr.mxu0 0.0
    %255 = vmatpush1.msra.mxu0 0.0
    %256 = vmatprep.subr.mxu0 0.0
    %257 = vmatpush1.msra.mxu0 0.0
    %258 = vmatprep.subr.mxu0 0.0
    %259 = vmatpush1.msra.mxu0 0.0
    %260 = vmatprep.subr.mxu0 0.0
    %261 = vmatpush1.msra.mxu0 0.0
    %262 = vmatprep.subr.mxu0 0.0
    %263 = vmatpush1.msra.mxu0 0.0
    %264 = vmatprep.subr.mxu0 0.0
    %265 = vmatpush1.msra.mxu0 0.0
    %266 = vmatprep.subr.mxu0 0.0
    %267 = vmatpush1.msra.mxu0 0.0
    %268 = vmatprep.subr.mxu0 0.0
    %269 = vmatpush1.msra.mxu0 0.0
    %270 = vmatprep.subr.mxu0 0.0
    %271 = vmatpush1.msra.mxu0 0.0
    %272 = vmatprep.subr.mxu0 0.0
    %273 = vmatpush1.msra.mxu0 0.0
    %274 = vmatprep.subr.mxu0 0.0
    %275 = vmatpush1.msra.mxu0 0.0
    %276 = vmatprep.subr.mxu0 0.0
    %277 = vmatpush1.msra.mxu0 0.0
    %278 = vmatprep.subr.mxu0 0.0
    %279 = vmatpush1.msra.mxu0 0.0
    %280 = vmatprep.subr.mxu0 0.0
    %281 = vmatpush1.msra.mxu0 0.0
    %282 = vmatprep.subr.mxu0 0.0
    %283 = vmatpush1.msra.mxu0 0.0
    %284 = vmatprep.subr.mxu0 0.0
    %285 = vmatpush1.msra.mxu0 0.0
    %286 = vmatprep.subr.mxu0 0.0
    %287 = vmatpush1.msra.mxu0 0.0
    %288 = vmatprep.subr.mxu0 0.0
    %289 = vmatpush1.msra.mxu0 0.0
    %290 = vmatprep.subr.mxu0 0.0
    %291 = vmatpush1.msra.mxu0 0.0
    %292 = vmatprep.subr.mxu0 0.0
    %293 = vmatpush1.msra.mxu0 0.0
    %294 = vmatprep.subr.mxu0 0.0
    %295 = vmatpush1.msra.mxu0 0.0
    %296 = vmatprep.subr.mxu0 0.0
    %297 = vmatpush1.msra.mxu0 0.0
    %298 = vmatprep.subr.mxu0 0.0
    %299 = vmatpush1.msra.mxu0 0.0
    %300 = vmatprep.subr.mxu0 0.0
    %301 = vmatpush1.msra.mxu0 0.0
    %302 = vmatprep.subr.mxu0 0.0
    %303 = vmatpush1.msra.mxu0 0.0
    %304 = vmatprep.subr.mxu0 0.0
    %305 = vmatpush1.msra.mxu0 0.0
    %306 = vmatprep.subr.mxu0 0.0
    %307 = vmatpush1.msra.mxu0 0.0
    %308 = vmatprep.subr.mxu0 0.0
    %309 = vmatpush1.msra.mxu0 0.0
    %310 = vmatprep.subr.mxu0 0.0
    %311 = vmatpush1.msra.mxu0 0.0
    %312 = vmatprep.subr.mxu0 0.0
    %313 = vmatpush1.msra.mxu0 0.0
    %314 = vmatprep.mubr.f32.mxu0 0.0
    %315 = vmatmul.mubr.f32.gmra.mrb[0].mxu0 %v248
    %v316 = vpop.f32.mrb[0].mxu0
    %v317 = vadd.f32 %v246, %v316
    %v318 = vpop.f32.mrb[0].mxu0
    %319 = vdwg.mxu0
    %vm320 = vcmp.ge.f32.partialorder %v317, 0.0
    %v321 = vmul.f32 %v317, 0.01
    %v322 = vsel %vm320, %v317, %v321
    %v323 = vld [vmem:[%s7] sm:$0xf]
    %v324 = vunpack.c.l.bf16 %v323
    %v325 = vld [vmem:[%s8] sm:$0x1]
    %v326 = vunpack.c.l.bf16 %v325
    %v327 = vlaneseq
    %v328 = vshrl.u32 %v327, 7
    %v329 = vsub.s32 0, %v328
    %v330 = vrot.slane %v326, %v329
    %vm331 = vcmask 64512
    %v333 = vsel %vm331, %v322, 0
    %335 = vmatprep.subr.mxu0 0.0
    %336 = vmatpush1.msra.mxu0 %v324
    %337 = vmatprep.subr.mxu0 0.0
    %338 = vmatpush1.msra.mxu0 0.0
    %339 = vmatprep.subr.mxu0 0.0
    %340 = vmatpush1.msra.mxu0 0.0
    %341 = vmatprep.subr.mxu0 0.0
    %342 = vmatpush1.msra.mxu0 0.0
    %343 = vmatprep.subr.mxu0 0.0
    %344 = vmatpush1.msra.mxu0 0.0
    %345 = vmatprep.subr.mxu0 0.0
    %346 = vmatpush1.msra.mxu0 0.0
    %347 = vmatprep.subr.mxu0 0.0
    %348 = vmatpush1.msra.mxu0 0.0
    %349 = vmatprep.subr.mxu0 0.0
    %350 = vmatpush1.msra.mxu0 0.0
    %351 = vmatprep.subr.mxu0 0.0
    %352 = vmatpush1.msra.mxu0 0.0
    %353 = vmatprep.subr.mxu0 0.0
    %354 = vmatpush1.msra.mxu0 0.0
    %355 = vmatprep.subr.mxu0 0.0
    %356 = vmatpush1.msra.mxu0 0.0
    %357 = vmatprep.subr.mxu0 0.0
    %358 = vmatpush1.msra.mxu0 0.0
    %359 = vmatprep.subr.mxu0 0.0
    %360 = vmatpush1.msra.mxu0 0.0
    %361 = vmatprep.subr.mxu0 0.0
    %362 = vmatpush1.msra.mxu0 0.0
    %363 = vmatprep.subr.mxu0 0.0
    %364 = vmatpush1.msra.mxu0 0.0
    %365 = vmatprep.subr.mxu0 0.0
    %366 = vmatpush1.msra.mxu0 0.0
    %367 = vmatprep.subr.mxu0 0.0
    %368 = vmatpush1.msra.mxu0 0.0
    %369 = vmatprep.subr.mxu0 0.0
    %370 = vmatpush1.msra.mxu0 0.0
    %371 = vmatprep.subr.mxu0 0.0
    %372 = vmatpush1.msra.mxu0 0.0
    %373 = vmatprep.subr.mxu0 0.0
    %374 = vmatpush1.msra.mxu0 0.0
    %375 = vmatprep.subr.mxu0 0.0
    %376 = vmatpush1.msra.mxu0 0.0
    %377 = vmatprep.subr.mxu0 0.0
    %378 = vmatpush1.msra.mxu0 0.0
    %379 = vmatprep.subr.mxu0 0.0
    %380 = vmatpush1.msra.mxu0 0.0
    %381 = vmatprep.subr.mxu0 0.0
    %382 = vmatpush1.msra.mxu0 0.0
    %383 = vmatprep.subr.mxu0 0.0
    %384 = vmatpush1.msra.mxu0 0.0
    %385 = vmatprep.subr.mxu0 0.0
    %386 = vmatpush1.msra.mxu0 0.0
    %387 = vmatprep.subr.mxu0 0.0
    %388 = vmatpush1.msra.mxu0 0.0
    %389 = vmatprep.subr.mxu0 0.0
    %390 = vmatpush1.msra.mxu0 0.0
    %391 = vmatprep.subr.mxu0 0.0
    %392 = vmatpush1.msra.mxu0 0.0
    %393 = vmatprep.subr.mxu0 0.0
    %394 = vmatpush1.msra.mxu0 0.0
    %395 = vmatprep.subr.mxu0 0.0
    %396 = vmatpush1.msra.mxu0 0.0
    %397 = vmatprep.subr.mxu0 0.0
    %398 = vmatpush1.msra.mxu0 0.0
    %399 = vmatprep.mubr.f32.mxu0 0.0
    %400 = vmatmul.mubr.f32.gmra.mrb[0].mxu0 %v333
    %v401 = vpop.f32.mrb[0].mxu0
    %v402 = vadd.f32 %v330, %v401
    %v403 = vpop.f32.mrb[0].mxu0
    %404 = vdwg.mxu0
    %v405 = vld [vmem:[%s9] sm:$0x3]
    %v406 = vunpack.c.l.bf16 %v405
    %v407 = vld [vmem:[%s10] sm:$0x1]
    %v408 = vunpack.c.l.bf16 %v407
    %v409 = vlaneseq
    %v410 = vshrl.u32 %v409, 7
    %v411 = vsub.s32 0, %v410
    %v412 = vrot.slane %v408, %v411
    %vm413 = vcmask 31744
    %v415 = vsel %vm413, %v402, 0
    %vm417 = vcmask 1043456
    %v419 = vsel %vm417, %v406, 0
    %421 = vmatprep.subr.mxu0 0.0
    %422 = vmatpush1.msra.mxu0 %v419
    %423 = vmatprep.subr.mxu0 0.0
    %424 = vmatpush1.msra.mxu0 0.0
    %425 = vmatprep.subr.mxu0 0.0
    %426 = vmatpush1.msra.mxu0 0.0
    %427 = vmatprep.subr.mxu0 0.0
    %428 = vmatpush1.msra.mxu0 0.0
    %429 = vmatprep.subr.mxu0 0.0
    %430 = vmatpush1.msra.mxu0 0.0
    %431 = vmatprep.subr.mxu0 0.0
    %432 = vmatpush1.msra.mxu0 0.0
    %433 = vmatprep.subr.mxu0 0.0
    %434 = vmatpush1.msra.mxu0 0.0
    %435 = vmatprep.subr.mxu0 0.0
    %436 = vmatpush1.msra.mxu0 0.0
    %437 = vmatprep.subr.mxu0 0.0
    %438 = vmatpush1.msra.mxu0 0.0
    %439 = vmatprep.subr.mxu0 0.0
    %440 = vmatpush1.msra.mxu0 0.0
    %441 = vmatprep.subr.mxu0 0.0
    %442 = vmatpush1.msra.mxu0 0.0
    %443 = vmatprep.subr.mxu0 0.0
    %444 = vmatpush1.msra.mxu0 0.0
    %445 = vmatprep.subr.mxu0 0.0
    %446 = vmatpush1.msra.mxu0 0.0
    %447 = vmatprep.subr.mxu0 0.0
    %448 = vmatpush1.msra.mxu0 0.0
    %449 = vmatprep.subr.mxu0 0.0
    %450 = vmatpush1.msra.mxu0 0.0
    %451 = vmatprep.subr.mxu0 0.0
    %452 = vmatpush1.msra.mxu0 0.0
    %453 = vmatprep.subr.mxu0 0.0
    %454 = vmatpush1.msra.mxu0 0.0
    %455 = vmatprep.subr.mxu0 0.0
    %456 = vmatpush1.msra.mxu0 0.0
    %457 = vmatprep.subr.mxu0 0.0
    %458 = vmatpush1.msra.mxu0 0.0
    %459 = vmatprep.subr.mxu0 0.0
    %460 = vmatpush1.msra.mxu0 0.0
    %461 = vmatprep.subr.mxu0 0.0
    %462 = vmatpush1.msra.mxu0 0.0
    %463 = vmatprep.subr.mxu0 0.0
    %464 = vmatpush1.msra.mxu0 0.0
    %465 = vmatprep.subr.mxu0 0.0
    %466 = vmatpush1.msra.mxu0 0.0
    %467 = vmatprep.subr.mxu0 0.0
    %468 = vmatpush1.msra.mxu0 0.0
    %469 = vmatprep.subr.mxu0 0.0
    %470 = vmatpush1.msra.mxu0 0.0
    %471 = vmatprep.subr.mxu0 0.0
    %472 = vmatpush1.msra.mxu0 0.0
    %473 = vmatprep.subr.mxu0 0.0
    %474 = vmatpush1.msra.mxu0 0.0
    %475 = vmatprep.subr.mxu0 0.0
    %476 = vmatpush1.msra.mxu0 0.0
    %477 = vmatprep.subr.mxu0 0.0
    %478 = vmatpush1.msra.mxu0 0.0
    %479 = vmatprep.subr.mxu0 0.0
    %480 = vmatpush1.msra.mxu0 0.0
    %481 = vmatprep.subr.mxu0 0.0
    %482 = vmatpush1.msra.mxu0 0.0
    %483 = vmatprep.subr.mxu0 0.0
    %484 = vmatpush1.msra.mxu0 0.0
    %485 = vmatprep.mubr.f32.mxu0 0.0
    %486 = vmatmul.mubr.f32.gmra.mrb[0].mxu0 %v415
    %v487 = vpop.f32.mrb[0].mxu0
    %v488 = vadd.f32 %v412, %v487
    %v489 = vpop.f32.mrb[0].mxu0
    %490 = vdwg.mxu0
    %vm491 = vcmp.ge.f32.partialorder %v488, 0.0
    %v492 = vmul.f32 %v488, 0.01
    %v493 = vsel %vm491, %v488, %v492
    %v494 = vld [vmem:[%s11] sm:$0xf]
    %v495 = vunpack.c.l.bf16 %v494
    %v496 = vld [vmem:[%s12] sm:$0x1]
    %v497 = vunpack.c.l.bf16 %v496
    %v498 = vlaneseq
    %v499 = vshrl.u32 %v498, 7
    %v500 = vsub.s32 0, %v499
    %v501 = vrot.slane %v497, %v500
    %v503 = vsel %vm331, %v493, 0
    %505 = vmatprep.subr.mxu0 0.0
    %506 = vmatpush1.msra.mxu0 %v495
    %507 = vmatprep.subr.mxu0 0.0
    %508 = vmatpush1.msra.mxu0 0.0
    %509 = vmatprep.subr.mxu0 0.0
    %510 = vmatpush1.msra.mxu0 0.0
    %511 = vmatprep.subr.mxu0 0.0
    %512 = vmatpush1.msra.mxu0 0.0
    %513 = vmatprep.subr.mxu0 0.0
    %514 = vmatpush1.msra.mxu0 0.0
    %515 = vmatprep.subr.mxu0 0.0
    %516 = vmatpush1.msra.mxu0 0.0
    %517 = vmatprep.subr.mxu0 0.0
    %518 = vmatpush1.msra.mxu0 0.0
    %519 = vmatprep.subr.mxu0 0.0
    %520 = vmatpush1.msra.mxu0 0.0
    %521 = vmatprep.subr.mxu0 0.0
    %522 = vmatpush1.msra.mxu0 0.0
    %523 = vmatprep.subr.mxu0 0.0
    %524 = vmatpush1.msra.mxu0 0.0
    %525 = vmatprep.subr.mxu0 0.0
    %526 = vmatpush1.msra.mxu0 0.0
    %527 = vmatprep.subr.mxu0 0.0
    %528 = vmatpush1.msra.mxu0 0.0
    %529 = vmatprep.subr.mxu0 0.0
    %530 = vmatpush1.msra.mxu0 0.0
    %531 = vmatprep.subr.mxu0 0.0
    %532 = vmatpush1.msra.mxu0 0.0
    %533 = vmatprep.subr.mxu0 0.0
    %534 = vmatpush1.msra.mxu0 0.0
    %535 = vmatprep.subr.mxu0 0.0
    %536 = vmatpush1.msra.mxu0 0.0
    %537 = vmatprep.subr.mxu0 0.0
    %538 = vmatpush1.msra.mxu0 0.0
    %539 = vmatprep.subr.mxu0 0.0
    %540 = vmatpush1.msra.mxu0 0.0
    %541 = vmatprep.subr.mxu0 0.0
    %542 = vmatpush1.msra.mxu0 0.0
    %543 = vmatprep.subr.mxu0 0.0
    %544 = vmatpush1.msra.mxu0 0.0
    %545 = vmatprep.subr.mxu0 0.0
    %546 = vmatpush1.msra.mxu0 0.0
    %547 = vmatprep.subr.mxu0 0.0
    %548 = vmatpush1.msra.mxu0 0.0
    %549 = vmatprep.subr.mxu0 0.0
    %550 = vmatpush1.msra.mxu0 0.0
    %551 = vmatprep.subr.mxu0 0.0
    %552 = vmatpush1.msra.mxu0 0.0
    %553 = vmatprep.subr.mxu0 0.0
    %554 = vmatpush1.msra.mxu0 0.0
    %555 = vmatprep.subr.mxu0 0.0
    %556 = vmatpush1.msra.mxu0 0.0
    %557 = vmatprep.subr.mxu0 0.0
    %558 = vmatpush1.msra.mxu0 0.0
    %559 = vmatprep.subr.mxu0 0.0
    %560 = vmatpush1.msra.mxu0 0.0
    %561 = vmatprep.subr.mxu0 0.0
    %562 = vmatpush1.msra.mxu0 0.0
    %563 = vmatprep.subr.mxu0 0.0
    %564 = vmatpush1.msra.mxu0 0.0
    %565 = vmatprep.subr.mxu0 0.0
    %566 = vmatpush1.msra.mxu0 0.0
    %567 = vmatprep.subr.mxu0 0.0
    %568 = vmatpush1.msra.mxu0 0.0
    %569 = vmatprep.mubr.f32.mxu0 0.0
    %570 = vmatmul.mubr.f32.gmra.mrb[0].mxu0 %v503
    %v571 = vpop.f32.mrb[0].mxu0
    %v572 = vadd.f32 %v501, %v571
    %v573 = vpop.f32.mrb[0].mxu0
    %574 = vdwg.mxu0
    %vm575 = vcmp.ge.f32.partialorder %v572, 0.0
    %v576 = vmul.f32 %v572, 0.01
    %v577 = vsel %vm575, %v572, %v576
    %v578 = vld [vmem:[%s13] sm:$0xf]
    %v579 = vld [vmem:[%s13 + $0x4] sm:$0xf]
    %v580 = vunpack.c.l.bf16 %v578
    %v581 = vunpack.c.l.bf16 %v579
    %v582 = vld [vmem:[%s14] sm:$0x1]
    %v583 = vunpack.c.l.bf16 %v582
    %v584 = vlaneseq
    %v585 = vshrl.u32 %v584, 7
    %v586 = vsub.s32 0, %v585
    %v587 = vrot.slane %v583, %v586
    %v589 = vsel %vm69, %v577, 0
    %591 = vmatprep.subr.mxu0 0.0
    %592 = vmatpush1.msra.mxu0 %v580
    %593 = vmatprep.subr.mxu0 0.0
    %594 = vmatpush1.msra.mxu0 %v581
    %595 = vmatprep.subr.mxu0 0.0
    %596 = vmatpush1.msra.mxu0 0.0
    %597 = vmatprep.subr.mxu0 0.0
    %598 = vmatpush1.msra.mxu0 0.0
    %599 = vmatprep.subr.mxu0 0.0
    %600 = vmatpush1.msra.mxu0 0.0
    %601 = vmatprep.subr.mxu0 0.0
    %602 = vmatpush1.msra.mxu0 0.0
    %603 = vmatprep.subr.mxu0 0.0
    %604 = vmatpush1.msra.mxu0 0.0
    %605 = vmatprep.subr.mxu0 0.0
    %606 = vmatpush1.msra.mxu0 0.0
    %607 = vmatprep.subr.mxu0 0.0
    %608 = vmatpush1.msra.mxu0 0.0
    %609 = vmatprep.subr.mxu0 0.0
    %610 = vmatpush1.msra.mxu0 0.0
    %611 = vmatprep.subr.mxu0 0.0
    %612 = vmatpush1.msra.mxu0 0.0
    %613 = vmatprep.subr.mxu0 0.0
    %614 = vmatpush1.msra.mxu0 0.0
    %615 = vmatprep.subr.mxu0 0.0
    %616 = vmatpush1.msra.mxu0 0.0
    %617 = vmatprep.subr.mxu0 0.0
    %618 = vmatpush1.msra.mxu0 0.0
    %619 = vmatprep.subr.mxu0 0.0
    %620 = vmatpush1.msra.mxu0 0.0
    %621 = vmatprep.subr.mxu0 0.0
    %622 = vmatpush1.msra.mxu0 0.0
    %623 = vmatprep.subr.mxu0 0.0
    %624 = vmatpush1.msra.mxu0 0.0
    %625 = vmatprep.subr.mxu0 0.0
    %626 = vmatpush1.msra.mxu0 0.0
    %627 = vmatprep.subr.mxu0 0.0
    %628 = vmatpush1.msra.mxu0 0.0
    %629 = vmatprep.subr.mxu0 0.0
    %630 = vmatpush1.msra.mxu0 0.0
    %631 = vmatprep.subr.mxu0 0.0
    %632 = vmatpush1.msra.mxu0 0.0
    %633 = vmatprep.subr.mxu0 0.0
    %634 = vmatpush1.msra.mxu0 0.0
    %635 = vmatprep.subr.mxu0 0.0
    %636 = vmatpush1.msra.mxu0 0.0
    %637 = vmatprep.subr.mxu0 0.0
    %638 = vmatpush1.msra.mxu0 0.0
    %639 = vmatprep.subr.mxu0 0.0
    %640 = vmatpush1.msra.mxu0 0.0
    %641 = vmatprep.subr.mxu0 0.0
    %642 = vmatpush1.msra.mxu0 0.0
    %643 = vmatprep.subr.mxu0 0.0
    %644 = vmatpush1.msra.mxu0 0.0
    %645 = vmatprep.subr.mxu0 0.0
    %646 = vmatpush1.msra.mxu0 0.0
    %647 = vmatprep.subr.mxu0 0.0
    %648 = vmatpush1.msra.mxu0 0.0
    %649 = vmatprep.subr.mxu0 0.0
    %650 = vmatpush1.msra.mxu0 0.0
    %651 = vmatprep.subr.mxu0 0.0
    %652 = vmatpush1.msra.mxu0 0.0
    %653 = vmatprep.subr.mxu0 0.0
    %654 = vmatpush1.msra.mxu0 0.0
    %655 = vmatprep.mubr.f32.mxu0 0.0
    %656 = vmatmul.mubr.f32.gmra.mrb[0].mxu0 %v589
    %v657 = vpop.f32.mrb[0].mxu0
    %v658 = vadd.f32 %v587, %v657
    %v659 = vpop.f32.mrb[0].mxu0
    %660 = vdwg.mxu0
    %vm661 = vcmp.ge.f32.partialorder %v658, 0.0
    %v662 = vmul.f32 %v658, 0.01
    %v663 = vsel %vm661, %v658, %v662
    %v664 = vld [vmem:[%s15] sm:$0xf]
    %v665 = vld [vmem:[%s15 + $0x4] sm:$0xf]
    %v666 = vld [vmem:[%s15 + $0x8] sm:$0xf]
    %v667 = vld [vmem:[%s15 + $0xc] sm:$0xf]
    %v668 = vunpack.c.l.bf16 %v664
    %v669 = vunpack.c.l.bf16 %v665
    %v670 = vunpack.c.l.bf16 %v666
    %v671 = vunpack.c.l.bf16 %v667
    %v672 = vld [vmem:[%s16] sm:$0x1]
    %v673 = vunpack.c.l.bf16 %v672
    %v674 = vlaneseq
    %v675 = vshrl.u32 %v674, 7
    %v676 = vsub.s32 0, %v675
    %v677 = vrot.slane %v673, %v676
    %v679 = vsel %vm160, %v663, 0
    %681 = vmatprep.subr.mxu0 0.0
    %682 = vmatpush1.msra.mxu0 %v668
    %683 = vmatprep.subr.mxu0 0.0
    %684 = vmatpush1.msra.mxu0 %v669
    %685 = vmatprep.subr.mxu0 0.0
    %686 = vmatpush1.msra.mxu0 %v670
    %687 = vmatprep.subr.mxu0 0.0
    %688 = vmatpush1.msra.mxu0 %v671
    %689 = vmatprep.subr.mxu0 0.0
    %690 = vmatpush1.msra.mxu0 0.0
    %691 = vmatprep.subr.mxu0 0.0
    %692 = vmatpush1.msra.mxu0 0.0
    %693 = vmatprep.subr.mxu0 0.0
    %694 = vmatpush1.msra.mxu0 0.0
    %695 = vmatprep.subr.mxu0 0.0
    %696 = vmatpush1.msra.mxu0 0.0
    %697 = vmatprep.subr.mxu0 0.0
    %698 = vmatpush1.msra.mxu0 0.0
    %699 = vmatprep.subr.mxu0 0.0
    %700 = vmatpush1.msra.mxu0 0.0
    %701 = vmatprep.subr.mxu0 0.0
    %702 = vmatpush1.msra.mxu0 0.0
    %703 = vmatprep.subr.mxu0 0.0
    %704 = vmatpush1.msra.mxu0 0.0
    %705 = vmatprep.subr.mxu0 0.0
    %706 = vmatpush1.msra.mxu0 0.0
    %707 = vmatprep.subr.mxu0 0.0
    %708 = vmatpush1.msra.mxu0 0.0
    %709 = vmatprep.subr.mxu0 0.0
    %710 = vmatpush1.msra.mxu0 0.0
    %711 = vmatprep.subr.mxu0 0.0
    %712 = vmatpush1.msra.mxu0 0.0
    %713 = vmatprep.subr.mxu0 0.0
    %714 = vmatpush1.msra.mxu0 0.0
    %715 = vmatprep.subr.mxu0 0.0
    %716 = vmatpush1.msra.mxu0 0.0
    %717 = vmatprep.subr.mxu0 0.0
    %718 = vmatpush1.msra.mxu0 0.0
    %719 = vmatprep.subr.mxu0 0.0
    %720 = vmatpush1.msra.mxu0 0.0
    %721 = vmatprep.subr.mxu0 0.0
    %722 = vmatpush1.msra.mxu0 0.0
    %723 = vmatprep.subr.mxu0 0.0
    %724 = vmatpush1.msra.mxu0 0.0
    %725 = vmatprep.subr.mxu0 0.0
    %726 = vmatpush1.msra.mxu0 0.0
    %727 = vmatprep.subr.mxu0 0.0
    %728 = vmatpush1.msra.mxu0 0.0
    %729 = vmatprep.subr.mxu0 0.0
    %730 = vmatpush1.msra.mxu0 0.0
    %731 = vmatprep.subr.mxu0 0.0
    %732 = vmatpush1.msra.mxu0 0.0
    %733 = vmatprep.subr.mxu0 0.0
    %734 = vmatpush1.msra.mxu0 0.0
    %735 = vmatprep.subr.mxu0 0.0
    %736 = vmatpush1.msra.mxu0 0.0
    %737 = vmatprep.subr.mxu0 0.0
    %738 = vmatpush1.msra.mxu0 0.0
    %739 = vmatprep.subr.mxu0 0.0
    %740 = vmatpush1.msra.mxu0 0.0
    %741 = vmatprep.subr.mxu0 0.0
    %742 = vmatpush1.msra.mxu0 0.0
    %743 = vmatprep.subr.mxu0 0.0
    %744 = vmatpush1.msra.mxu0 0.0
    %745 = vmatprep.mubr.f32.mxu0 0.0
    %746 = vmatmul.mubr.f32.gmra.mrb[0].mxu0 %v679
    %v747 = vpop.f32.mrb[0].mxu0
    %v748 = vadd.f32 %v677, %v747
    %v749 = vpop.f32.mrb[0].mxu0
    %750 = vdwg.mxu0
    %v751 = vsub.f32 0.0, %v748
    %v752 = vmul.f32 %v751, 1.442695
    %v753 = vpow.pop %v752
    %v754 = vadd.f32 %v753, 1.0
    %v755 = vrcp.pop %v754
    %v756 = vmul.f32 1.0, %v755
    %v757 = vpack.c.bf16 %v756, %v756
    %vm758 = vcmask 125952
    %759 = vst.msk [vmem:[#allocation2] sm:$0xf] %vm758, %v757
    // Predicated region
    $region70: #{autoencoder_forward.1} parent=1 // pred_check
      _
    $region71: #{autoencoder_forward.1} parent=1 // pred_check_branch
      %761 = sbr.rel (0) target = $region73
    $region72: #{autoencoder_forward.1} parent=1 // pred_region
      %s763 = ssub.s32 64, 64
      %764 = vsyncadd [#allocation3], %s763
      %s766 = sshll.u32 [#allocation2], 4
      %s767 = int_to_ptr.vmem [resolvable:$true] %s766
      %769 = dma.vmem_to_hbm [thread:$0]  %s767, 64, %s17, [#allocation3]
    $region73: #{autoencoder_forward.1} parent=1 // pred_fallthru
      _
    // Predicated region
    $region74: #{autoencoder_forward.1} parent=1 // pred_check
      _
    $region75: #{autoencoder_forward.1} parent=1 // pred_check_branch
      %771 = sbr.rel (0) target = $region77
    $region76: #{autoencoder_forward.1} parent=1 // pred_region
      %772 = dma.done [#allocation3], 64
    $region77: #{autoencoder_forward.1} parent=1 // pred_fallthru
      _
    %773 = vsyncpa [#allocation3], 1

</llo_original>
